<compile_context>
chip_gen: v7x
topology: tpu7x:2x2x1
jax: 0.10.0
libtpu: 0.0.40
codegen_flags: <defaults>
</compile_context>

<pallas_src>
import numpy as np
import jax
import jax.numpy as jnp
from jax.experimental import pallas as pl
from jax.experimental.pallas import tpu as pltpu


def prcnptn_forward(x, weight, bias, index, *, G, CMP, out_channels, padding, stride,
                    vmem_budget_bytes=16 * 1024 * 1024):
    """x: (N, Cin, H, W) f32; weight: (G*Cin, 1, KH, KW); bias: (G*Cin,);
    index: fixed ("permanent") random connectome -> treated as a static permutation."""
    index = np.asarray(index).astype(np.int64)
    N, Cin, H, W = x.shape
    E, _, KH, KW = weight.shape
    assert E == G * Cin
    # TODO(synk): general stride would need strided lane gathers on the flattened plane; stride=1 only.
    assert stride == 1
    Hp, Wp = H + 2 * padding, W + 2 * padding
    Ho, Wo = Hp - KH + 1, Wp - KW + 1
    avg = (Cin * G) // (CMP * out_channels)
    assert CMP * out_channels * avg == E, "expansion must equal CMP*out_channels*avgpoolSize"
    T = KH * KW

    # ---- static layout planning -------------------------------------------------
    # per-image flattened padded plane, rounded up so the lane axis is 128-dense
    S = ((Hp * Wp + 127) // 128) * 128
    # images per grid step under a conservative VMEM budget
    # (double-buffered in/out blocks + expansion scratch + accumulator/temporaries)
    bytes_per_img = 4 * S * (2 * Cin + 2 * out_channels + 3 * E)
    Nb = max(1, min(N, vmem_budget_bytes // bytes_per_img))
    # keep >=2 grid steps when possible so v7x's 2 TensorCores both get work
    if N >= 2:
        Nb = min(Nb, -(-N // 2))
    nB = -(-N // Nb)
    N_pad = nB * Nb
    L = Nb * S            # lane width per block (multiple of 128)

    # acc row r holds the ORIGINAL conv channel k(r) = (r % Cin)*G + r//Cin, whose input
    # source is r % Cin -> the G-fold expansion inside the kernel is G block-copies of
    # the Cin input rows (no G x duplication of the input in HBM).
    rows_k = (np.arange(E) % Cin) * G + (np.arange(E) // Cin)
    # permuted position e -> acc row that holds conv channel index[e]  (static epilogue map)
    row_of_perm = [int((k % G) * Cin + (k // G)) for k in index.tolist()]

    OC, AVG = out_channels, avg
    inv_avg = 1.0 / float(avg)

    def kernel(x_ref, w_ref, b_ref, o_ref, xexp_ref):
        # x_ref: (1, Cin, L)  w_ref: (E, T)  b_ref: (E, 1)  o_ref: (1, OC, L)  xexp_ref: (E, L) scratch
        x = x_ref[0]                                   # (Cin, L)
        for g in range(G):                             # G-fold channel expansion in VMEM only
            xexp_ref[g * Cin:(g + 1) * Cin, :] = x
        xe = xexp_ref[...]                             # (E, L)

        acc = jnp.zeros((E, L), jnp.float32)
        for t in range(T):                             # KH*KW taps, statically unrolled
            dy, dx = t // KW, t % KW
            s = dy * Wp + dx                           # flattened in-image offset of this tap
            xr = xe if s == 0 else pltpu.roll(xe, (L - s) % L, 1)   # lane roll (XLU), no slices
            acc = acc + xr * w_ref[:, t:t + 1]         # (E,L) * (E,1) per-channel weight broadcast
        acc = acc + b_ref[...]                         # bias, (E,1) broadcast

        # channel max-pool (CMP) then channel avg-pool (AVG); the random permutation is
        # folded into the static row map, so this is pure elementwise max/add on rows.
        for o in range(OC):
            ssum = None
            for a in range(AVG):
                m = None
                for c in range(CMP):
                    r = row_of_perm[(o * AVG + a) * CMP + c]
                    v = acc[r:r + 1, :]                # (1, L)
                    m = v if m is None else jnp.maximum(m, v)
                ssum = m if ssum is None else ssum + m
            o_ref[0, o:o + 1, :] = (ssum * inv_avg).astype(o_ref.dtype)

    def _run(x, weight, bias):
        # pack: pad batch+spatial, flatten each padded image to a 128-aligned segment,
        # stack Nb images per grid step along the lane axis (one fused producer under jit).
        xp = jnp.pad(x, ((0, N_pad - N), (0, 0), (padding, padding), (padding, padding)))
        xp = xp.reshape(N_pad, Cin, Hp * Wp)
        xp = jnp.pad(xp, ((0, 0), (0, 0), (0, S - Hp * Wp)))
        xp = xp.reshape(nB, Nb, Cin, S).transpose(0, 2, 1, 3).reshape(nB, Cin, L)

        # weights/bias reordered to acc-row order; 2-D with the (padded) tap axis last,
        # no trailing (1,1) tile-padding blowup.
        w2 = weight[rows_k, 0].reshape(E, T).astype(jnp.float32)
        b2 = bias[rows_k].reshape(E, 1).astype(jnp.float32)

        out_p = pl.pallas_call(
            kernel,
            out_shape=jax.ShapeDtypeStruct((nB, OC, L), x.dtype),
            grid=(nB,),
            in_specs=[
                pl.BlockSpec((1, Cin, L), lambda i: (i, 0, 0)),
                pl.BlockSpec((E, T), lambda i: (0, 0)),   # same block every step -> DMA'd once
                pl.BlockSpec((E, 1), lambda i: (0, 0)),
            ],
            out_specs=pl.BlockSpec((1, OC, L), lambda i: (i, 0, 0)),
            scratch_shapes=[pltpu.VMEM((E, L), jnp.float32)],
            compiler_params=pltpu.CompilerParams(
                dimension_semantics=("parallel",),
                vmem_limit_bytes=32 * 1024 * 1024,
            ),
        )(xp, w2, b2)

        # unpack the lane-packed output and drop the padded junk rows/cols
        out = out_p.reshape(nB, OC, Nb, S).transpose(0, 2, 1, 3).reshape(N_pad, OC, S)
        out = out[:N, :, :Hp * Wp].reshape(N, OC, Hp, Wp)[:, :, :Ho, :Wo]
        return out

    return jax.jit(_run)(x, weight, bias)


def ref_forward(x, weight, bias, index, *, G, CMP, out_channels, padding, stride):
    """Pure-JAX reference mirroring the PyTorch forward."""
    Cin = x.shape[1]
    out_conv = jax.lax.conv_general_dilated(
        x, weight,
        window_strides=(stride, stride),
        padding=[(padding, padding), (padding, padding)],
        dimension_numbers=("NCHW", "OIHW", "NCHW"),
        feature_group_count=Cin,
    ) + bias[None, :, None, None]
    out = out_conv[:, index, :, :]
    N, E, Ho, Wo = out.shape
    out = out.reshape(N, E // CMP, CMP, Ho, Wo).max(axis=2)
    avg = (Cin * G) // (CMP * out_channels)
    out = out.reshape(N, out_channels, avg, Ho, Wo).mean(axis=2)
    return out


if __name__ == "__main__":
    # small shapes consistent with the module
    in_channels, out_channels, G, CMP = 4, 4, 4, 2
    kernel_size, padding, stride = 3, 1, 1
    N, H, W = 2, 16, 16
    E = G * in_channels                      # expansion = 16, avgpoolSize = 2

    key = jax.random.PRNGKey(0)
    kx, kw, kb, kp = jax.random.split(key, 4)
    x = jax.random.normal(kx, (N, in_channels, H, W), jnp.float32)
    weight = jax.random.normal(kw, (E, 1, kernel_size, kernel_size), jnp.float32) * 0.1
    bias = jax.random.normal(kb, (E,), jnp.float32) * 0.1
    # the module's fixed shuffled `randomList` (a permanent, static connectome)
    index = np.asarray(jax.random.permutation(kp, E))

    out = prcnptn_forward(x, weight, bias, index, G=G, CMP=CMP,
                          out_channels=out_channels, padding=padding, stride=stride)
    out = jax.block_until_ready(out)

    ref = ref_forward(x, weight, bias, index, G=G, CMP=CMP,
                      out_channels=out_channels, padding=padding, stride=stride)
    np.testing.assert_allclose(np.asarray(out), np.asarray(ref), rtol=1e-5, atol=1e-5)
    assert out.shape == (N, out_channels, H, W)
    print("KERNEL_OK")
</pallas_src>

<mosaic_0001>
module attributes {stable_mosaic.version = 11 : i64} {
  func.func @kernel(%arg0: i32, %arg1: memref<1x4x384xf32, #tpu.memory_space<vmem>>, %arg2: memref<16x9xf32, #tpu.memory_space<vmem>>, %arg3: memref<16x1xf32, #tpu.memory_space<vmem>>, %arg4: memref<1x4x384xf32, #tpu.memory_space<vmem>>, %arg5: memref<16x384xf32, #tpu.memory_space<vmem>>) attributes {dimension_semantics = [#tpu.dimension_semantics<parallel>], iteration_bounds = array<i64: 2>, scalar_prefetch = 0 : i64, scratch_operands = 1 : i64, tpu.core_type = #tpu.core_type<tc>, window_params = [{transform_indices = @transform_0, window_bounds = array<i64: 1, 4, 384>}, {pipeline_mode = #tpu.pipeline_mode<synchronous>, transform_indices = @transform_1, window_bounds = array<i64: 16, 9>}, {pipeline_mode = #tpu.pipeline_mode<synchronous>, transform_indices = @transform_2, window_bounds = array<i64: 16, 1>}, {transform_indices = @transform_3, window_bounds = array<i64: 1, 4, 384>}]} {
    %c0 = arith.constant 0 : index
    %c0_0 = arith.constant 0 : index
    %c0_1 = arith.constant 0 : index
    %0 = vector.load %arg1[%c0, %c0_0, %c0_1] : memref<1x4x384xf32, #tpu.memory_space<vmem>>, vector<1x4x384xf32>
    %1 = vector.shape_cast %0 : vector<1x4x384xf32> to vector<4x384xf32>
    %c0_2 = arith.constant 0 : index
    %c0_3 = arith.constant 0 : index
    %2 = vector.load %arg5[%c0_2, %c0_3] : memref<16x384xf32, #tpu.memory_space<vmem>>, vector<4x384xf32>
    tpu.vector_store %arg5[%c0_2, %c0_3], %1 {strides = array<i32>} : memref<16x384xf32, #tpu.memory_space<vmem>>, vector<4x384xf32>,
    %c4 = arith.constant 4 : index
    %c0_4 = arith.constant 0 : index
    %3 = vector.load %arg5[%c4, %c0_4] : memref<16x384xf32, #tpu.memory_space<vmem>>, vector<4x384xf32>
    tpu.vector_store %arg5[%c4, %c0_4], %1 {strides = array<i32>} : memref<16x384xf32, #tpu.memory_space<vmem>>, vector<4x384xf32>,
    %c8 = arith.constant 8 : index
    %c0_5 = arith.constant 0 : index
    %4 = vector.load %arg5[%c8, %c0_5] : memref<16x384xf32, #tpu.memory_space<vmem>>, vector<4x384xf32>
    tpu.vector_store %arg5[%c8, %c0_5], %1 {strides = array<i32>} : memref<16x384xf32, #tpu.memory_space<vmem>>, vector<4x384xf32>,
    %c12 = arith.constant 12 : index
    %c0_6 = arith.constant 0 : index
    %5 = vector.load %arg5[%c12, %c0_6] : memref<16x384xf32, #tpu.memory_space<vmem>>, vector<4x384xf32>
    tpu.vector_store %arg5[%c12, %c0_6], %1 {strides = array<i32>} : memref<16x384xf32, #tpu.memory_space<vmem>>, vector<4x384xf32>,
    %c0_7 = arith.constant 0 : index
    %c0_8 = arith.constant 0 : index
    %6 = vector.load %arg5[%c0_7, %c0_8] : memref<16x384xf32, #tpu.memory_space<vmem>>, vector<16x384xf32>
    %cst = arith.constant 0.000000e+00 : f32
    %7 = vector.broadcast %cst : f32 to vector<16x384xf32>
    %c0_9 = arith.constant 0 : index
    %c0_10 = arith.constant 0 : index
    %8 = vector.load %arg2[%c0_9, %c0_10] : memref<16x9xf32, #tpu.memory_space<vmem>>, vector<16x1xf32>
    %9 = vector.broadcast %8 : vector<16x1xf32> to vector<16x384xf32>
    %10 = arith.mulf %6, %9 : vector<16x384xf32>
    %11 = arith.addf %7, %10 : vector<16x384xf32>
    %c383_i32 = arith.constant 383 : i32
    %12 = tpu.dynamic_rotate %6 by %c383_i32 dim 1 : vector<16x384xf32>, i32 -> vector<16x384xf32>
    %c0_11 = arith.constant 0 : index
    %c1 = arith.constant 1 : index
    %13 = vector.load %arg2[%c0_11, %c1] : memref<16x9xf32, #tpu.memory_space<vmem>>, vector<16x1xf32>
    %14 = vector.broadcast %13 : vector<16x1xf32> to vector<16x384xf32>
    %15 = arith.mulf %12, %14 : vector<16x384xf32>
    %16 = arith.addf %11, %15 : vector<16x384xf32>
    %c382_i32 = arith.constant 382 : i32
    %17 = tpu.dynamic_rotate %6 by %c382_i32 dim 1 : vector<16x384xf32>, i32 -> vector<16x384xf32>
    %c0_12 = arith.constant 0 : index
    %c2 = arith.constant 2 : index
    %18 = vector.load %arg2[%c0_12, %c2] : memref<16x9xf32, #tpu.memory_space<vmem>>, vector<16x1xf32>
    %19 = vector.broadcast %18 : vector<16x1xf32> to vector<16x384xf32>
    %20 = arith.mulf %17, %19 : vector<16x384xf32>
    %21 = arith.addf %16, %20 : vector<16x384xf32>
    %c366_i32 = arith.constant 366 : i32
    %22 = tpu.dynamic_rotate %6 by %c366_i32 dim 1 : vector<16x384xf32>, i32 -> vector<16x384xf32>
    %c0_13 = arith.constant 0 : index
    %c3 = arith.constant 3 : index
    %23 = vector.load %arg2[%c0_13, %c3] : memref<16x9xf32, #tpu.memory_space<vmem>>, vector<16x1xf32>
    %24 = vector.broadcast %23 : vector<16x1xf32> to vector<16x384xf32>
    %25 = arith.mulf %22, %24 : vector<16x384xf32>
    %26 = arith.addf %21, %25 : vector<16x384xf32>
    %c365_i32 = arith.constant 365 : i32
    %27 = tpu.dynamic_rotate %6 by %c365_i32 dim 1 : vector<16x384xf32>, i32 -> vector<16x384xf32>
    %c0_14 = arith.constant 0 : index
    %c4_15 = arith.constant 4 : index
    %28 = vector.load %arg2[%c0_14, %c4_15] : memref<16x9xf32, #tpu.memory_space<vmem>>, vector<16x1xf32>
    %29 = vector.broadcast %28 : vector<16x1xf32> to vector<16x384xf32>
    %30 = arith.mulf %27, %29 : vector<16x384xf32>
    %31 = arith.addf %26, %30 : vector<16x384xf32>
    %c364_i32 = arith.constant 364 : i32
    %32 = tpu.dynamic_rotate %6 by %c364_i32 dim 1 : vector<16x384xf32>, i32 -> vector<16x384xf32>
    %c0_16 = arith.constant 0 : index
    %c5 = arith.constant 5 : index
    %33 = vector.load %arg2[%c0_16, %c5] : memref<16x9xf32, #tpu.memory_space<vmem>>, vector<16x1xf32>
    %34 = vector.broadcast %33 : vector<16x1xf32> to vector<16x384xf32>
    %35 = arith.mulf %32, %34 : vector<16x384xf32>
    %36 = arith.addf %31, %35 : vector<16x384xf32>
    %c348_i32 = arith.constant 348 : i32
    %37 = tpu.dynamic_rotate %6 by %c348_i32 dim 1 : vector<16x384xf32>, i32 -> vector<16x384xf32>
    %c0_17 = arith.constant 0 : index
    %c6 = arith.constant 6 : index
    %38 = vector.load %arg2[%c0_17, %c6] : memref<16x9xf32, #tpu.memory_space<vmem>>, vector<16x1xf32>
    %39 = vector.broadcast %38 : vector<16x1xf32> to vector<16x384xf32>
    %40 = arith.mulf %37, %39 : vector<16x384xf32>
    %41 = arith.addf %36, %40 : vector<16x384xf32>
    %c347_i32 = arith.constant 347 : i32
    %42 = tpu.dynamic_rotate %6 by %c347_i32 dim 1 : vector<16x384xf32>, i32 -> vector<16x384xf32>
    %c0_18 = arith.constant 0 : index
    %c7 = arith.constant 7 : index
    %43 = vector.load %arg2[%c0_18, %c7] : memref<16x9xf32, #tpu.memory_space<vmem>>, vector<16x1xf32>
    %44 = vector.broadcast %43 : vector<16x1xf32> to vector<16x384xf32>
    %45 = arith.mulf %42, %44 : vector<16x384xf32>
    %46 = arith.addf %41, %45 : vector<16x384xf32>
    %c346_i32 = arith.constant 346 : i32
    %47 = tpu.dynamic_rotate %6 by %c346_i32 dim 1 : vector<16x384xf32>, i32 -> vector<16x384xf32>
    %c0_19 = arith.constant 0 : index
    %c8_20 = arith.constant 8 : index
    %48 = vector.load %arg2[%c0_19, %c8_20] : memref<16x9xf32, #tpu.memory_space<vmem>>, vector<16x1xf32>
    %49 = vector.broadcast %48 : vector<16x1xf32> to vector<16x384xf32>
    %50 = arith.mulf %47, %49 : vector<16x384xf32>
    %51 = arith.addf %46, %50 : vector<16x384xf32>
    %c0_21 = arith.constant 0 : index
    %c0_22 = arith.constant 0 : index
    %52 = vector.load %arg3[%c0_21, %c0_22] : memref<16x1xf32, #tpu.memory_space<vmem>>, vector<16x1xf32>
    %53 = vector.broadcast %52 : vector<16x1xf32> to vector<16x384xf32>
    %54 = arith.addf %51, %53 : vector<16x384xf32>
    %55 = vector.extract_strided_slice %54 {offsets = [3, 0], sizes = [1, 384], strides = [1, 1]} : vector<16x384xf32> to vector<1x384xf32>
    %56 = vector.extract_strided_slice %54 {offsets = [14, 0], sizes = [1, 384], strides = [1, 1]} : vector<16x384xf32> to vector<1x384xf32>
    %57 = arith.maximumf %55, %56 : vector<1x384xf32>
    %58 = vector.extract_strided_slice %54 {offsets = [2, 0], sizes = [1, 384], strides = [1, 1]} : vector<16x384xf32> to vector<1x384xf32>
    %59 = vector.extract_strided_slice %54 {offsets = [11, 0], sizes = [1, 384], strides = [1, 1]} : vector<16x384xf32> to vector<1x384xf32>
    %60 = arith.maximumf %58, %59 : vector<1x384xf32>
    %61 = arith.addf %57, %60 : vector<1x384xf32>
    %cst_23 = arith.constant 5.000000e-01 : f32
    %62 = vector.broadcast %cst_23 : f32 to vector<1x384xf32>
    %63 = arith.mulf %61, %62 : vector<1x384xf32>
    %c0_24 = arith.constant 0 : index
    %c0_25 = arith.constant 0 : index
    %c0_26 = arith.constant 0 : index
    %64 = vector.load %arg4[%c0_24, %c0_25, %c0_26] : memref<1x4x384xf32, #tpu.memory_space<vmem>>, vector<1x1x384xf32>
    %65 = vector.shape_cast %64 : vector<1x1x384xf32> to vector<1x384xf32>
    %66 = vector.shape_cast %63 : vector<1x384xf32> to vector<1x1x384xf32>
    tpu.vector_store %arg4[%c0_24, %c0_25, %c0_26], %66 {strides = array<i32>} : memref<1x4x384xf32, #tpu.memory_space<vmem>>, vector<1x1x384xf32>,
    %67 = vector.extract_strided_slice %54 {offsets = [10, 0], sizes = [1, 384], strides = [1, 1]} : vector<16x384xf32> to vector<1x384xf32>
    %68 = vector.extract_strided_slice %54 {offsets = [8, 0], sizes = [1, 384], strides = [1, 1]} : vector<16x384xf32> to vector<1x384xf32>
    %69 = arith.maximumf %67, %68 : vector<1x384xf32>
    %70 = vector.extract_strided_slice %54 {offsets = [6, 0], sizes = [1, 384], strides = [1, 1]} : vector<16x384xf32> to vector<1x384xf32>
    %71 = vector.extract_strided_slice %54 {offsets = [4, 0], sizes = [1, 384], strides = [1, 1]} : vector<16x384xf32> to vector<1x384xf32>
    %72 = arith.maximumf %70, %71 : vector<1x384xf32>
    %73 = arith.addf %69, %72 : vector<1x384xf32>
    %cst_27 = arith.constant 5.000000e-01 : f32
    %74 = vector.broadcast %cst_27 : f32 to vector<1x384xf32>
    %75 = arith.mulf %73, %74 : vector<1x384xf32>
    %c0_28 = arith.constant 0 : index
    %c1_29 = arith.constant 1 : index
    %c0_30 = arith.constant 0 : index
    %76 = vector.load %arg4[%c0_28, %c1_29, %c0_30] : memref<1x4x384xf32, #tpu.memory_space<vmem>>, vector<1x1x384xf32>
    %77 = vector.shape_cast %76 : vector<1x1x384xf32> to vector<1x384xf32>
    %78 = vector.shape_cast %75 : vector<1x384xf32> to vector<1x1x384xf32>
    tpu.vector_store %arg4[%c0_28, %c1_29, %c0_30], %78 {strides = array<i32>} : memref<1x4x384xf32, #tpu.memory_space<vmem>>, vector<1x1x384xf32>,
    %79 = vector.extract_strided_slice %54 {offsets = [15, 0], sizes = [1, 384], strides = [1, 1]} : vector<16x384xf32> to vector<1x384xf32>
    %80 = vector.extract_strided_slice %54 {offsets = [13, 0], sizes = [1, 384], strides = [1, 1]} : vector<16x384xf32> to vector<1x384xf32>
    %81 = arith.maximumf %79, %80 : vector<1x384xf32>
    %82 = vector.extract_strided_slice %54 {offsets = [1, 0], sizes = [1, 384], strides = [1, 1]} : vector<16x384xf32> to vector<1x384xf32>
    %83 = vector.extract_strided_slice %54 {offsets = [12, 0], sizes = [1, 384], strides = [1, 1]} : vector<16x384xf32> to vector<1x384xf32>
    %84 = arith.maximumf %82, %83 : vector<1x384xf32>
    %85 = arith.addf %81, %84 : vector<1x384xf32>
    %cst_31 = arith.constant 5.000000e-01 : f32
    %86 = vector.broadcast %cst_31 : f32 to vector<1x384xf32>
    %87 = arith.mulf %85, %86 : vector<1x384xf32>
    %c0_32 = arith.constant 0 : index
    %c2_33 = arith.constant 2 : index
    %c0_34 = arith.constant 0 : index
    %88 = vector.load %arg4[%c0_32, %c2_33, %c0_34] : memref<1x4x384xf32, #tpu.memory_space<vmem>>, vector<1x1x384xf32>
    %89 = vector.shape_cast %88 : vector<1x1x384xf32> to vector<1x384xf32>
    %90 = vector.shape_cast %87 : vector<1x384xf32> to vector<1x1x384xf32>
    tpu.vector_store %arg4[%c0_32, %c2_33, %c0_34], %90 {strides = array<i32>} : memref<1x4x384xf32, #tpu.memory_space<vmem>>, vector<1x1x384xf32>,
    %91 = vector.extract_strided_slice %54 {offsets = [5, 0], sizes = [1, 384], strides = [1, 1]} : vector<16x384xf32> to vector<1x384xf32>
    %92 = vector.extract_strided_slice %54 {offsets = [9, 0], sizes = [1, 384], strides = [1, 1]} : vector<16x384xf32> to vector<1x384xf32>
    %93 = arith.maximumf %91, %92 : vector<1x384xf32>
    %94 = vector.extract_strided_slice %54 {offsets = [0, 0], sizes = [1, 384], strides = [1, 1]} : vector<16x384xf32> to vector<1x384xf32>
    %95 = vector.extract_strided_slice %54 {offsets = [7, 0], sizes = [1, 384], strides = [1, 1]} : vector<16x384xf32> to vector<1x384xf32>
    %96 = arith.maximumf %94, %95 : vector<1x384xf32>
    %97 = arith.addf %93, %96 : vector<1x384xf32>
    %cst_35 = arith.constant 5.000000e-01 : f32
    %98 = vector.broadcast %cst_35 : f32 to vector<1x384xf32>
    %99 = arith.mulf %97, %98 : vector<1x384xf32>
    %c0_36 = arith.constant 0 : index
    %c3_37 = arith.constant 3 : index
    %c0_38 = arith.constant 0 : index
    %100 = vector.load %arg4[%c0_36, %c3_37, %c0_38] : memref<1x4x384xf32, #tpu.memory_space<vmem>>, vector<1x1x384xf32>
    %101 = vector.shape_cast %100 : vector<1x1x384xf32> to vector<1x384xf32>
    %102 = vector.shape_cast %99 : vector<1x384xf32> to vector<1x1x384xf32>
    tpu.vector_store %arg4[%c0_36, %c3_37, %c0_38], %102 {strides = array<i32>} : memref<1x4x384xf32, #tpu.memory_space<vmem>>, vector<1x1x384xf32>,
    return
  }
  func.func @transform_0(%arg0: i32) -> (i32, i32, i32) {
    %c0_i32 = arith.constant 0 : i32
    %c0_i32_0 = arith.constant 0 : i32
    %c0_i32_1 = arith.constant 0 : i32
    return %arg0, %c0_i32, %c0_i32_0 : i32, i32, i32
  }
  func.func @transform_1(%arg0: i32) -> (i32, i32) {
    %c0_i32 = arith.constant 0 : i32
    %c0_i32_0 = arith.constant 0 : i32
    %c0_i32_1 = arith.constant 0 : i32
    return %c0_i32, %c0_i32_0 : i32, i32
  }
  func.func @transform_2(%arg0: i32) -> (i32, i32) {
    %c0_i32 = arith.constant 0 : i32
    %c0_i32_0 = arith.constant 0 : i32
    %c0_i32_1 = arith.constant 0 : i32
    return %c0_i32, %c0_i32_0 : i32, i32
  }
  func.func @transform_3(%arg0: i32) -> (i32, i32, i32) {
    %c0_i32 = arith.constant 0 : i32
    %c0_i32_0 = arith.constant 0 : i32
    %c0_i32_1 = arith.constant 0 : i32
    return %arg0, %c0_i32, %c0_i32_0 : i32, i32, i32
  }
}

</mosaic_0001>

<llo_original>
// kernel: _run.1
$region0: #{_run.1}
  #allocation0 [shape = 'u32[]', space=smem, size = 0x4, offset = 0x4, fixed_abs, tag = 'smem constant byte address 0x4 - core index']
  #allocation1 [shape = 'u32[144,128]{1,0:T(1,128)}', space=vmem, size = 0x12000, scoped, tag = 'internal scratch']
  #allocation2 [shape = 'f32[16,384]{1,0:T(8,128)}', space=vmem, size = 0x6000, scoped, tag = 'scratch operand']
  %s0 = inlined_call_operand.vmem [shape: f32[2,4,384], index: 0, kind: input, shape index: {}]
  %s1 = inlined_call_operand.vmem [shape: f32[16,9], index: 1, kind: input, shape index: {}]
  %s2 = inlined_call_operand.vmem [shape: f32[16,1], index: 2, kind: input, shape index: {}]
  %s3 = inlined_call_operand.vmem [shape: f32[2,4,384], index: 3, kind: output, shape index: {}]
  %s4 = sld [smem:[#allocation0]]
  $region45: #{_run.1} parent=0
    _
  %s6 = ssub.s32 1, %s4
  %s7 = scalar_select 0, %s6, %s4
  loop: start=0, step=1, limit=4
  $region2: #{_run.1} parent=0 // loop_pre_header
    _
  $region3: #{_run.1} parent=0 // loop_header
    %s9 = sphi 0, %s13
    %p10 = scmp.ge.s32.totalorder %s9, 4
    %s19 = sphi 0, %s21
    %s22 = sphi 0, %s19
    %s23 = sphi 0, %s22
    %s39 = sphi 0, %s23
    %s43 = sphi 0, %s43
    %s45 = sphi 0, %s43
    %s46 = sphi 0, %s45
    %s60 = sphi 0, %s46
    %s64 = sphi 0, %s64
    %s66 = sphi 0, %s64
    %s67 = sphi 0, %s66
    %s81 = sphi 0, %s67
    %s87 = sphi 0, %s89
    %s90 = sphi 0, %s87
    %s91 = sphi 0, %s90
    %s107 = sphi 0, %s91
  $region4: #{_run.1} parent=0 // loop_header_branch
    %12 = sbr.rel (%p10) target = $region8
  $region5: #{_run.1} parent=0 // loop_body
    %s14 = ssub.s32 %s9, 1
    %s15 = ssub.s32 %s9, 2
    %s16 = sadd.s32 %s9, 1
    %s17 = ssub.s32 %s9, %s16
    %p18 = scmp.eq.s32.totalorder %s17, 0
    %s20 = sadd.s32 %s19, 1
    %s21 = scalar_select %p18, %s19, %s20
    %p24 = pneg %p18
    %p25 = scmp.eq.s32.totalorder %s9, 1
    %p26 = por %p24, %p25
    %p27 = scmp.ne.s32.totalorder %s19, %s22
    %p28 = scmp.eq.s32.totalorder %s9, 0
    %p29 = por %p27, %p28
    %p30 = scmp.ne.s32.totalorder %s19, %s22
    %p31 = scmp.eq.s32.totalorder %s14, 1
    %p32 = por %p30, %p31
    %p33 = scmp.ne.s32.totalorder %s22, %s23
    %p34 = scmp.eq.s32.totalorder %s14, 0
    %p35 = por %p33, %p34
    %p36 = scmp.ne.s32.totalorder %s22, %s23
    %p37 = scmp.eq.s32.totalorder %s15, 1
    %p38 = por %p36, %p37
    %p40 = scmp.ne.s32.totalorder %s23, %s39
    %p41 = scmp.eq.s32.totalorder %s15, 0
    %p42 = por %p40, %p41
    %s44 = sadd.s32 %s43, 1
    %p47 = scmp.eq.s32.totalorder %s9, 1
    %p48 = scmp.ne.s32.totalorder %s43, %s45
    %p49 = scmp.eq.s32.totalorder %s9, 0
    %p50 = por %p48, %p49
    %p51 = scmp.ne.s32.totalorder %s43, %s45
    %p52 = scmp.eq.s32.totalorder %s14, 1
    %p53 = por %p51, %p52
    %p54 = scmp.ne.s32.totalorder %s45, %s46
    %p55 = scmp.eq.s32.totalorder %s14, 0
    %p56 = por %p54, %p55
    %p57 = scmp.ne.s32.totalorder %s45, %s46
    %p58 = scmp.eq.s32.totalorder %s15, 1
    %p59 = por %p57, %p58
    %p61 = scmp.ne.s32.totalorder %s46, %s60
    %p62 = scmp.eq.s32.totalorder %s15, 0
    %p63 = por %p61, %p62
    %s65 = sadd.s32 %s64, 1
    %p68 = scmp.eq.s32.totalorder %s9, 1
    %p69 = scmp.ne.s32.totalorder %s64, %s66
    %p70 = scmp.eq.s32.totalorder %s9, 0
    %p71 = por %p69, %p70
    %p72 = scmp.ne.s32.totalorder %s64, %s66
    %p73 = scmp.eq.s32.totalorder %s14, 1
    %p74 = por %p72, %p73
    %p75 = scmp.ne.s32.totalorder %s66, %s67
    %p76 = scmp.eq.s32.totalorder %s14, 0
    %p77 = por %p75, %p76
    %p78 = scmp.ne.s32.totalorder %s66, %s67
    %p79 = scmp.eq.s32.totalorder %s15, 1
    %p80 = por %p78, %p79
    %p82 = scmp.ne.s32.totalorder %s67, %s81
    %p83 = scmp.eq.s32.totalorder %s15, 0
    %p84 = por %p82, %p83
    %s85 = ssub.s32 %s9, %s16
    %p86 = scmp.eq.s32.totalorder %s85, 0
    %s88 = sadd.s32 %s87, 1
    %s89 = scalar_select %p86, %s87, %s88
    %p92 = pneg %p86
    %p93 = scmp.eq.s32.totalorder %s9, 1
    %p94 = por %p92, %p93
    %p95 = scmp.ne.s32.totalorder %s87, %s90
    %p96 = scmp.eq.s32.totalorder %s9, 0
    %p97 = por %p95, %p96
    %p98 = scmp.ne.s32.totalorder %s87, %s90
    %p99 = scmp.eq.s32.totalorder %s14, 1
    %p100 = por %p98, %p99
    %p101 = scmp.ne.s32.totalorder %s90, %s91
    %p102 = scmp.eq.s32.totalorder %s14, 0
    %p103 = por %p101, %p102
    %p104 = scmp.ne.s32.totalorder %s90, %s91
    %p105 = scmp.eq.s32.totalorder %s15, 1
    %p106 = por %p104, %p105
    %p108 = scmp.ne.s32.totalorder %s91, %s107
    %p109 = scmp.eq.s32.totalorder %s15, 0
    %p110 = por %p108, %p109
    %p111 = scmp.le.s32.totalorder 1, %s9
    %p112 = scmp.lt.s32.totalorder %s9, 3
    %p113 = pnand %p111, %p112
    %p114 = pneg %p113
    // Predicated region
    $region9: #{_run.1} parent=5 // pred_check
      _
    $region10: #{_run.1} parent=5 // pred_check_branch
      %116 = sbr.rel (%p113) target = $region12
    $region11: #{_run.1} parent=5 // pred_region
      %s117 = ssub.s32 %s9, 1
      // Predicated region
      $region13: #{_run.1} parent=11 // pred_check
        %p118 = pneg %p56
      $region14: #{_run.1} parent=11 // pred_check_branch
        %120 = sbr.rel (%p118) target = $region16
      $region15: #{_run.1} parent=11 // pred_region
        _
      $region16: #{_run.1} parent=11 // pred_fallthru
        _
      // Predicated region
      $region17: #{_run.1} parent=11 // pred_check
        %p121 = pneg %p77
      $region18: #{_run.1} parent=11 // pred_check_branch
        %123 = sbr.rel (%p121) target = $region20
      $region19: #{_run.1} parent=11 // pred_region
        _
      $region20: #{_run.1} parent=11 // pred_fallthru
        _
    $region12: #{_run.1} parent=5 // pred_fallthru
      _
    %p124 = scmp.lt.s32.totalorder %s9, 2
    // Predicated region
    $region21: #{_run.1} parent=5 // pred_check
      %p125 = pneg %p124
    $region22: #{_run.1} parent=5 // pred_check_branch
      %127 = sbr.rel (%p125) target = $region24
    $region23: #{_run.1} parent=5 // pred_region
      // Predicated region
      $region25: #{_run.1} parent=23 // pred_check
        %p128 = pneg %p29
      $region26: #{_run.1} parent=23 // pred_check_branch
        %130 = sbr.rel (%p128) target = $region28
      $region27: #{_run.1} parent=23 // pred_region
        %p131 = scmp.lt.s32.totalorder %s9, 1
        %s132 = scalar_select %p131, %s9, 1
        %s133 = smul.addr %s132, 3
        %s134 = smul.addr %s133, 4
        %s135 = scalar_lea.vmem %s0, %s134
      $region28: #{_run.1} parent=23 // pred_fallthru
        _
    $region24: #{_run.1} parent=5 // pred_fallthru
      _
    %p136 = scmp.le.s32.totalorder 1, %s9
    %p137 = scmp.lt.s32.totalorder %s9, 3
    %p138 = pnand %p136, %p137
    %p139 = pneg %p138
    // Predicated region
    $region29: #{_run.1} parent=5 // pred_check
      _
    $region30: #{_run.1} parent=5 // pred_check_branch
      %141 = sbr.rel (%p138) target = $region32
    $region31: #{_run.1} parent=5 // pred_region
      %s142 = ssub.s32 %s9, 1
      %p143 = scmp.lt.s32.totalorder %s14, 1
      %s144 = scalar_select %p143, %s14, 1
      %s145 = smul.addr %s144, 3
      %s146 = smul.addr %s145, 4
      %s147 = scalar_lea.vmem %s0, %s146
      %p148 = pneg %p35
      %p149 = pneg %p32
      %p150 = pneg %p56
      %p151 = pneg %p53
      %p152 = pneg %p77
      %p153 = pneg %p74
      %p154 = pneg %p103
      %p155 = pneg %p100
      %p156 = scmp.lt.s32.totalorder %s14, 1
      %s157 = scalar_select %p156, %s14, 1
      %s158 = smul.addr %s157, 3
      %s159 = smul.addr %s158, 4
      %s160 = scalar_lea.vmem %s3, %s159
      %p161 = scmp.lt.s32.totalorder %s14, 1
      %s162 = scalar_select %p161, %s14, 1
      %s163 = smul.addr %s162, 3
      %s164 = smul.addr %s163, 4
      %s165 = scalar_lea.vmem %s0, %s164
      %p166 = scmp.lt.s32.totalorder %s14, 1
      %s167 = scalar_select %p166, %s14, 1
      %s168 = smul.addr %s167, 3
      %s169 = smul.addr %s168, 4
      %s170 = scalar_lea.vmem %s3, %s169
      %v171 = vld [vmem:[%s165] sm:$0xff]
      %v172 = vld [vmem:[%s165 + $0x8] sm:$0xf]
      %v175 = vcombine.high %v171, %v171
      %177 = vst [vmem:[#allocation2] sm:$0xf] %v171
      %178 = vst [vmem:[#allocation2 + $0x8] sm:$0xf] %v175
      %179 = vst [vmem:[#allocation2 + $0x10] sm:$0xf] %v172
      %v180 = vcombine.low %v171, %v171
      %v181 = vcombine.low %v172, %v172
      %184 = vst [vmem:[#allocation2] sm:$0xf0] %v180
      %185 = vst [vmem:[#allocation2 + $0x8] sm:$0xf0] %v171
      %186 = vst [vmem:[#allocation2 + $0x10] sm:$0xf0] %v181
      %187 = vst [vmem:[#allocation2 + $0x18] sm:$0xf] %v171
      %188 = vst [vmem:[#allocation2 + $0x20] sm:$0xf] %v175
      %189 = vst [vmem:[#allocation2 + $0x28] sm:$0xf] %v172
      %190 = vst [vmem:[#allocation2 + $0x18] sm:$0xf0] %v180
      %191 = vst [vmem:[#allocation2 + $0x20] sm:$0xf0] %v171
      %192 = vst [vmem:[#allocation2 + $0x28] sm:$0xf0] %v181
      %v193 = vld [vmem:[#allocation2] sm:$0xff]
      %v194 = vld [vmem:[#allocation2 + $0x8] sm:$0xff]
      %v195 = vld [vmem:[#allocation2 + $0x10] sm:$0xff]
      %v196 = vld [vmem:[#allocation2 + $0x18] sm:$0xff]
      %v197 = vld [vmem:[#allocation2 + $0x20] sm:$0xff]
      %v198 = vld [vmem:[#allocation2 + $0x28] sm:$0xff]
      %v199 = vld [vmem:[%s1] sm:$0xff]
      %v200 = vld [vmem:[%s1 + $0x8] sm:$0xff]
      %202 = vset.pattern.permute.xlu0 0
      %203 = vperm.xlu0 %202, %v199
      %v204 = vpop.permute.xlu0 %203
      %207 = vset.pattern.permute.xlu0 0
      %208 = vperm.xlu0 %207, %v200
      %v209 = vpop.permute.xlu0 %208
      %v211 = vmul.f32 %v193, %v204
      %v212 = vmul.f32 %v194, %v204
      %v213 = vmul.f32 %v195, %v204
      %v214 = vmul.f32 %v196, %v209
      %v215 = vmul.f32 %v197, %v209
      %v216 = vmul.f32 %v198, %v209
      %v217 = vadd.f32 %v211, 0.0
      %v218 = vadd.f32 %v212, 0.0
      %v219 = vadd.f32 %v213, 0.0
      %v220 = vadd.f32 %v214, 0.0
      %v221 = vadd.f32 %v215, 0.0
      %v222 = vadd.f32 %v216, 0.0
      %223 = vrot.lane.b32.xlu0 %v193, 127
      %v224 = vpop.permute.xlu0 %223
      %225 = vrot.lane.b32.xlu0 %v196, 127
      %v226 = vpop.permute.xlu0 %225
      %227 = vrot.lane.b32.xlu0 %v194, 127
      %v228 = vpop.permute.xlu0 %227
      %229 = vrot.lane.b32.xlu0 %v197, 127
      %v230 = vpop.permute.xlu0 %229
      %231 = vrot.lane.b32.xlu0 %v195, 127
      %v232 = vpop.permute.xlu0 %231
      %233 = vrot.lane.b32.xlu0 %v198, 127
      %v234 = vpop.permute.xlu0 %233
      %v235 = vlaneseq
      %v236 = vand.u32 %v235, 127
      %vm237 = vcmp.lt.s32.totalorder %v236, 127
      %v238 = vsel %vm237, %v228, %v232
      %v239 = vsel %vm237, %v230, %v234
      %v240 = vsel %vm237, %v224, %v228
      %v241 = vsel %vm237, %v226, %v230
      %v242 = vsel %vm237, %v232, %v224
      %v243 = vsel %vm237, %v234, %v226
      %244 = vset.pattern.permute.xlu0 1
      %245 = vperm.xlu0 %244, %v199
      %v246 = vpop.permute.xlu0 %245
      %248 = vset.pattern.permute.xlu0 1
      %249 = vperm.xlu0 %248, %v200
      %v250 = vpop.permute.xlu0 %249
      %v252 = vmul.f32 %v240, %v246
      %v253 = vmul.f32 %v238, %v246
      %v254 = vmul.f32 %v242, %v246
      %v255 = vmul.f32 %v241, %v250
      %v256 = vmul.f32 %v239, %v250
      %v257 = vmul.f32 %v243, %v250
      %v258 = vadd.f32 %v217, %v252
      %v259 = vadd.f32 %v218, %v253
      %v260 = vadd.f32 %v219, %v254
      %v261 = vadd.f32 %v220, %v255
      %v262 = vadd.f32 %v221, %v256
      %v263 = vadd.f32 %v222, %v257
      %264 = vrot.lane.b32.xlu0 %v193, 126
      %v265 = vpop.permute.xlu0 %264
      %266 = vrot.lane.b32.xlu0 %v196, 126
      %v267 = vpop.permute.xlu0 %266
      %268 = vrot.lane.b32.xlu0 %v194, 126
      %v269 = vpop.permute.xlu0 %268
      %270 = vrot.lane.b32.xlu0 %v197, 126
      %v271 = vpop.permute.xlu0 %270
      %272 = vrot.lane.b32.xlu0 %v195, 126
      %v273 = vpop.permute.xlu0 %272
      %274 = vrot.lane.b32.xlu0 %v198, 126
      %v275 = vpop.permute.xlu0 %274
      %vm276 = vcmp.lt.s32.totalorder %v236, 126
      %v277 = vsel %vm276, %v269, %v273
      %v278 = vsel %vm276, %v271, %v275
      %v279 = vsel %vm276, %v265, %v269
      %v280 = vsel %vm276, %v267, %v271
      %v281 = vsel %vm276, %v273, %v265
      %v282 = vsel %vm276, %v275, %v267
      %283 = vset.pattern.permute.xlu0 2
      %284 = vperm.xlu0 %283, %v199
      %v285 = vpop.permute.xlu0 %284
      %287 = vset.pattern.permute.xlu0 2
      %288 = vperm.xlu0 %287, %v200
      %v289 = vpop.permute.xlu0 %288
      %v291 = vmul.f32 %v279, %v285
      %v292 = vmul.f32 %v277, %v285
      %v293 = vmul.f32 %v281, %v285
      %v294 = vmul.f32 %v280, %v289
      %v295 = vmul.f32 %v278, %v289
      %v296 = vmul.f32 %v282, %v289
      %v297 = vadd.f32 %v258, %v291
      %v298 = vadd.f32 %v259, %v292
      %v299 = vadd.f32 %v260, %v293
      %v300 = vadd.f32 %v261, %v294
      %v301 = vadd.f32 %v262, %v295
      %v302 = vadd.f32 %v263, %v296
      %303 = vrot.lane.b32.xlu0 %v193, 110
      %v304 = vpop.permute.xlu0 %303
      %305 = vrot.lane.b32.xlu0 %v196, 110
      %v306 = vpop.permute.xlu0 %305
      %307 = vrot.lane.b32.xlu0 %v194, 110
      %v308 = vpop.permute.xlu0 %307
      %309 = vrot.lane.b32.xlu0 %v197, 110
      %v310 = vpop.permute.xlu0 %309
      %311 = vrot.lane.b32.xlu0 %v195, 110
      %v312 = vpop.permute.xlu0 %311
      %313 = vrot.lane.b32.xlu0 %v198, 110
      %v314 = vpop.permute.xlu0 %313
      %vm315 = vcmp.lt.s32.totalorder %v236, 110
      %v316 = vsel %vm315, %v308, %v312
      %v317 = vsel %vm315, %v310, %v314
      %v318 = vsel %vm315, %v304, %v308
      %v319 = vsel %vm315, %v306, %v310
      %v320 = vsel %vm315, %v312, %v304
      %v321 = vsel %vm315, %v314, %v306
      %322 = vset.pattern.permute.xlu0 3
      %323 = vperm.xlu0 %322, %v199
      %v324 = vpop.permute.xlu0 %323
      %326 = vset.pattern.permute.xlu0 3
      %327 = vperm.xlu0 %326, %v200
      %v328 = vpop.permute.xlu0 %327
      %v330 = vmul.f32 %v318, %v324
      %v331 = vmul.f32 %v316, %v324
      %v332 = vmul.f32 %v320, %v324
      %v333 = vmul.f32 %v319, %v328
      %v334 = vmul.f32 %v317, %v328
      %v335 = vmul.f32 %v321, %v328
      %v336 = vadd.f32 %v297, %v330
      %v337 = vadd.f32 %v298, %v331
      %v338 = vadd.f32 %v299, %v332
      %v339 = vadd.f32 %v300, %v333
      %v340 = vadd.f32 %v301, %v334
      %v341 = vadd.f32 %v302, %v335
      %342 = vrot.lane.b32.xlu0 %v193, 109
      %v343 = vpop.permute.xlu0 %342
      %344 = vrot.lane.b32.xlu0 %v196, 109
      %v345 = vpop.permute.xlu0 %344
      %346 = vrot.lane.b32.xlu0 %v194, 109
      %v347 = vpop.permute.xlu0 %346
      %348 = vrot.lane.b32.xlu0 %v197, 109
      %v349 = vpop.permute.xlu0 %348
      %350 = vrot.lane.b32.xlu0 %v195, 109
      %v351 = vpop.permute.xlu0 %350
      %352 = vrot.lane.b32.xlu0 %v198, 109
      %v353 = vpop.permute.xlu0 %352
      %vm354 = vcmp.lt.s32.totalorder %v236, 109
      %v355 = vsel %vm354, %v347, %v351
      %v356 = vsel %vm354, %v349, %v353
      %v357 = vsel %vm354, %v343, %v347
      %v358 = vsel %vm354, %v345, %v349
      %v359 = vsel %vm354, %v351, %v343
      %v360 = vsel %vm354, %v353, %v345
      %361 = vset.pattern.permute.xlu0 4
      %362 = vperm.xlu0 %361, %v199
      %v363 = vpop.permute.xlu0 %362
      %365 = vset.pattern.permute.xlu0 4
      %366 = vperm.xlu0 %365, %v200
      %v367 = vpop.permute.xlu0 %366
      %v369 = vmul.f32 %v357, %v363
      %v370 = vmul.f32 %v355, %v363
      %v371 = vmul.f32 %v359, %v363
      %v372 = vmul.f32 %v358, %v367
      %v373 = vmul.f32 %v356, %v367
      %v374 = vmul.f32 %v360, %v367
      %v375 = vadd.f32 %v336, %v369
      %v376 = vadd.f32 %v337, %v370
      %v377 = vadd.f32 %v338, %v371
      %v378 = vadd.f32 %v339, %v372
      %v379 = vadd.f32 %v340, %v373
      %v380 = vadd.f32 %v341, %v374
      %381 = vrot.lane.b32.xlu0 %v193, 108
      %v382 = vpop.permute.xlu0 %381
      %383 = vrot.lane.b32.xlu0 %v196, 108
      %v384 = vpop.permute.xlu0 %383
      %385 = vrot.lane.b32.xlu0 %v194, 108
      %v386 = vpop.permute.xlu0 %385
      %387 = vrot.lane.b32.xlu0 %v197, 108
      %v388 = vpop.permute.xlu0 %387
      %389 = vrot.lane.b32.xlu0 %v195, 108
      %v390 = vpop.permute.xlu0 %389
      %391 = vrot.lane.b32.xlu0 %v198, 108
      %v392 = vpop.permute.xlu0 %391
      %vm393 = vcmp.lt.s32.totalorder %v236, 108
      %v394 = vsel %vm393, %v386, %v390
      %v395 = vsel %vm393, %v388, %v392
      %v396 = vsel %vm393, %v382, %v386
      %v397 = vsel %vm393, %v384, %v388
      %v398 = vsel %vm393, %v390, %v382
      %v399 = vsel %vm393, %v392, %v384
      %400 = vset.pattern.permute.xlu0 5
      %401 = vperm.xlu0 %400, %v199
      %v402 = vpop.permute.xlu0 %401
      %404 = vset.pattern.permute.xlu0 5
      %405 = vperm.xlu0 %404, %v200
      %v406 = vpop.permute.xlu0 %405
      %v408 = vmul.f32 %v396, %v402
      %v409 = vmul.f32 %v394, %v402
      %v410 = vmul.f32 %v398, %v402
      %v411 = vmul.f32 %v397, %v406
      %v412 = vmul.f32 %v395, %v406
      %v413 = vmul.f32 %v399, %v406
      %v414 = vadd.f32 %v375, %v408
      %v415 = vadd.f32 %v376, %v409
      %v416 = vadd.f32 %v377, %v410
      %v417 = vadd.f32 %v378, %v411
      %v418 = vadd.f32 %v379, %v412
      %v419 = vadd.f32 %v380, %v413
      %420 = vrot.lane.b32.xlu0 %v193, 92
      %v421 = vpop.permute.xlu0 %420
      %422 = vrot.lane.b32.xlu0 %v196, 92
      %v423 = vpop.permute.xlu0 %422
      %424 = vrot.lane.b32.xlu0 %v194, 92
      %v425 = vpop.permute.xlu0 %424
      %426 = vrot.lane.b32.xlu0 %v197, 92
      %v427 = vpop.permute.xlu0 %426
      %428 = vrot.lane.b32.xlu0 %v195, 92
      %v429 = vpop.permute.xlu0 %428
      %430 = vrot.lane.b32.xlu0 %v198, 92
      %v431 = vpop.permute.xlu0 %430
      %vm432 = vcmp.lt.s32.totalorder %v236, 92
      %v433 = vsel %vm432, %v425, %v429
      %v434 = vsel %vm432, %v427, %v431
      %v435 = vsel %vm432, %v421, %v425
      %v436 = vsel %vm432, %v423, %v427
      %v437 = vsel %vm432, %v429, %v421
      %v438 = vsel %vm432, %v431, %v423
      %439 = vset.pattern.permute.xlu0 6
      %440 = vperm.xlu0 %439, %v199
      %v441 = vpop.permute.xlu0 %440
      %443 = vset.pattern.permute.xlu0 6
      %444 = vperm.xlu0 %443, %v200
      %v445 = vpop.permute.xlu0 %444
      %v447 = vmul.f32 %v435, %v441
      %v448 = vmul.f32 %v433, %v441
      %v449 = vmul.f32 %v437, %v441
      %v450 = vmul.f32 %v436, %v445
      %v451 = vmul.f32 %v434, %v445
      %v452 = vmul.f32 %v438, %v445
      %v453 = vadd.f32 %v414, %v447
      %v454 = vadd.f32 %v415, %v448
      %v455 = vadd.f32 %v416, %v449
      %v456 = vadd.f32 %v417, %v450
      %v457 = vadd.f32 %v418, %v451
      %v458 = vadd.f32 %v419, %v452
      %459 = vrot.lane.b32.xlu0 %v193, 91
      %v460 = vpop.permute.xlu0 %459
      %461 = vrot.lane.b32.xlu0 %v196, 91
      %v462 = vpop.permute.xlu0 %461
      %463 = vrot.lane.b32.xlu0 %v194, 91
      %v464 = vpop.permute.xlu0 %463
      %465 = vrot.lane.b32.xlu0 %v197, 91
      %v466 = vpop.permute.xlu0 %465
      %467 = vrot.lane.b32.xlu0 %v195, 91
      %v468 = vpop.permute.xlu0 %467
      %469 = vrot.lane.b32.xlu0 %v198, 91
      %v470 = vpop.permute.xlu0 %469
      %vm471 = vcmp.lt.s32.totalorder %v236, 91
      %v472 = vsel %vm471, %v464, %v468
      %v473 = vsel %vm471, %v466, %v470
      %v474 = vsel %vm471, %v460, %v464
      %v475 = vsel %vm471, %v462, %v466
      %v476 = vsel %vm471, %v468, %v460
      %v477 = vsel %vm471, %v470, %v462
      %478 = vset.pattern.permute.xlu0 7
      %479 = vperm.xlu0 %478, %v199
      %v480 = vpop.permute.xlu0 %479
      %482 = vset.pattern.permute.xlu0 7
      %483 = vperm.xlu0 %482, %v200
      %v484 = vpop.permute.xlu0 %483
      %v486 = vmul.f32 %v474, %v480
      %v487 = vmul.f32 %v472, %v480
      %v488 = vmul.f32 %v476, %v480
      %v489 = vmul.f32 %v475, %v484
      %v490 = vmul.f32 %v473, %v484
      %v491 = vmul.f32 %v477, %v484
      %v492 = vadd.f32 %v453, %v486
      %v493 = vadd.f32 %v454, %v487
      %v494 = vadd.f32 %v455, %v488
      %v495 = vadd.f32 %v456, %v489
      %v496 = vadd.f32 %v457, %v490
      %v497 = vadd.f32 %v458, %v491
      %498 = vrot.lane.b32.xlu0 %v193, 90
      %v499 = vpop.permute.xlu0 %498
      %500 = vrot.lane.b32.xlu0 %v196, 90
      %v501 = vpop.permute.xlu0 %500
      %502 = vrot.lane.b32.xlu0 %v194, 90
      %v503 = vpop.permute.xlu0 %502
      %504 = vrot.lane.b32.xlu0 %v197, 90
      %v505 = vpop.permute.xlu0 %504
      %506 = vrot.lane.b32.xlu0 %v195, 90
      %v507 = vpop.permute.xlu0 %506
      %508 = vrot.lane.b32.xlu0 %v198, 90
      %v509 = vpop.permute.xlu0 %508
      %vm510 = vcmp.lt.s32.totalorder %v236, 90
      %v511 = vsel %vm510, %v503, %v507
      %v512 = vsel %vm510, %v505, %v509
      %v513 = vsel %vm510, %v499, %v503
      %v514 = vsel %vm510, %v501, %v505
      %v515 = vsel %vm510, %v507, %v499
      %v516 = vsel %vm510, %v509, %v501
      %517 = vset.pattern.permute.xlu0 8
      %518 = vperm.xlu0 %517, %v199
      %v519 = vpop.permute.xlu0 %518
      %521 = vset.pattern.permute.xlu0 8
      %522 = vperm.xlu0 %521, %v200
      %v523 = vpop.permute.xlu0 %522
      %v525 = vmul.f32 %v513, %v519
      %v526 = vmul.f32 %v511, %v519
      %v527 = vmul.f32 %v515, %v519
      %v528 = vmul.f32 %v514, %v523
      %v529 = vmul.f32 %v512, %v523
      %v530 = vmul.f32 %v516, %v523
      %v531 = vadd.f32 %v492, %v525
      %v532 = vadd.f32 %v493, %v526
      %v533 = vadd.f32 %v494, %v527
      %v534 = vadd.f32 %v495, %v528
      %v535 = vadd.f32 %v496, %v529
      %v536 = vadd.f32 %v497, %v530
      %v537 = vld [vmem:[%s2] sm:$0xff]
      %v538 = vld [vmem:[%s2 + $0x8] sm:$0xff]
      %540 = vset.pattern.permute.xlu0 0
      %541 = vperm.xlu0 %540, %v537
      %v542 = vpop.permute.xlu0 %541
      %545 = vset.pattern.permute.xlu0 0
      %546 = vperm.xlu0 %545, %v538
      %v547 = vpop.permute.xlu0 %546
      %v549 = vadd.f32 %v531, %v542
      %v550 = vadd.f32 %v532, %v542
      %v551 = vadd.f32 %v533, %v542
      %v552 = vadd.f32 %v534, %v547
      %v553 = vadd.f32 %v535, %v547
      %v554 = vadd.f32 %v536, %v547
      %v558 = vrot.slane %v552, 3
      %v559 = vrot.slane %v553, 3
      %v560 = vrot.slane %v554, 3
      %v564 = vmax.f32 %v549, %v558
      %v565 = vmax.f32 %v550, %v559
      %v566 = vmax.f32 %v551, %v560
      %v567 = vrot.slane %v552, 1
      %v568 = vrot.slane %v553, 1
      %v569 = vrot.slane %v554, 1
      %v573 = vmax.f32 %v549, %v567
      %v574 = vmax.f32 %v550, %v568
      %v575 = vmax.f32 %v551, %v569
      %v579 = vrot.slane %v573, 7
      %v580 = vrot.slane %v574, 7
      %v581 = vrot.slane %v575, 7
      %v585 = vadd.f32 %v564, %v579
      %v586 = vadd.f32 %v565, %v580
      %v587 = vadd.f32 %v566, %v581
      %v588 = vmul.f32 %v585, 0.5
      %v589 = vmul.f32 %v586, 0.5
      %v590 = vmul.f32 %v587, 0.5
      %v594 = vcombine.low %v588, %v589
      %v596 = vunpack.c.l.s4 1966171168
      %v597 = vunpack.c.0.s8 %v596
      %v598 = vlaneseq
      %v599 = vshrl.u32 %v598, 7
      %v600 = vsub.s32 %v597, %v599
      %v601 = vrot.slane %v594, %v600
      %v603 = vunpack.c.l.s4 1966171168
      %v604 = vunpack.c.0.s8 %v603
      %v605 = vlaneseq
      %v606 = vshrl.u32 %v605, 7
      %v607 = vsub.s32 %v604, %v606
      %v608 = vrot.slane %v590, %v607
      %v609 = vcombine.high %v601, %v608
      %v611 = vunpack.c.l.s4 1966171168
      %v612 = vunpack.c.0.s8 %v611
      %v613 = vlaneseq
      %v614 = vshrl.u32 %v613, 7
      %v615 = vsub.s32 %v612, %v614
      %v616 = vrot.slane %v609, %v615
      %v617 = vcombine.high %v616, %v616
      %v619 = vlaneseq
      %vm620 = vcmp.ge.s32.totalorder %v619, 0
      %vm621 = vcmp.lt.s32.totalorder %v619, 384
      %vm622 = vmand %vm620, %vm621
      %623 = vst.msk [vmem:[%s170] ss:$4 sm:$0x7] %vm622, %v617
      %v624 = vrot.slane %v552, 6
      %v625 = vrot.slane %v553, 6
      %v626 = vrot.slane %v554, 6
      %v630 = vmax.f32 %v552, %v624
      %v631 = vmax.f32 %v553, %v625
      %v632 = vmax.f32 %v554, %v626
      %v636 = vrot.slane %v549, 6
      %v637 = vrot.slane %v550, 6
      %v638 = vrot.slane %v551, 6
      %v642 = vmax.f32 %v549, %v636
      %v643 = vmax.f32 %v550, %v637
      %v644 = vmax.f32 %v551, %v638
      %v648 = vrot.slane %v642, 4
      %v649 = vrot.slane %v643, 4
      %v650 = vrot.slane %v644, 4
      %v654 = vadd.f32 %v630, %v648
      %v655 = vadd.f32 %v631, %v649
      %v656 = vadd.f32 %v632, %v650
      %v657 = vmul.f32 %v654, 0.5
      %v658 = vmul.f32 %v655, 0.5
      %v659 = vmul.f32 %v656, 0.5
      %v663 = vcombine.low %v657, %v658
      %v665 = vunpack.c.l.s4 1966171168
      %v666 = vunpack.c.0.s8 %v665
      %v667 = vlaneseq
      %v668 = vshrl.u32 %v667, 7
      %v669 = vsub.s32 %v666, %v668
      %v670 = vrot.slane %v663, %v669
      %v672 = vunpack.c.l.s4 1966171168
      %v673 = vunpack.c.0.s8 %v672
      %v674 = vlaneseq
      %v675 = vshrl.u32 %v674, 7
      %v676 = vsub.s32 %v673, %v675
      %v677 = vrot.slane %v659, %v676
      %v678 = vcombine.low %v670, %v677
      %v680 = vunpack.c.l.s4 1966171168
      %v681 = vunpack.c.0.s8 %v680
      %v682 = vlaneseq
      %v683 = vshrl.u32 %v682, 7
      %v684 = vsub.s32 %v681, %v683
      %v685 = vrot.slane %v678, %v684
      %v686 = vcombine.high %v685, %v685
      %s688 = scalar_lea.vmem %s170, 1
      %689 = vst.msk [vmem:[%s688] ss:$4 sm:$0x7] %vm622, %v686
      %v693 = vrot.slane %v564, 2
      %v694 = vrot.slane %v565, 2
      %v695 = vrot.slane %v566, 2
      %v699 = vadd.f32 %v630, %v693
      %v700 = vadd.f32 %v631, %v694
      %v701 = vadd.f32 %v632, %v695
      %v702 = vmul.f32 %v699, 0.5
      %v703 = vmul.f32 %v700, 0.5
      %v704 = vmul.f32 %v701, 0.5
      %v708 = vcombine.high %v702, %v703
      %v709 = vcombine.high %v704, %v704
      %v711 = vunpack.c.l.s4 1966171168
      %v712 = vunpack.c.0.s8 %v711
      %v713 = vlaneseq
      %v714 = vshrl.u32 %v713, 7
      %v715 = vsub.s32 %v712, %v714
      %v716 = vrot.slane %v708, %v715
      %v718 = vunpack.c.l.s4 1966171168
      %v719 = vunpack.c.0.s8 %v718
      %v720 = vlaneseq
      %v721 = vshrl.u32 %v720, 7
      %v722 = vsub.s32 %v719, %v721
      %v723 = vrot.slane %v709, %v722
      %v724 = vcombine.high %v716, %v723
      %v726 = vunpack.c.l.s4 1966171168
      %v727 = vunpack.c.0.s8 %v726
      %v728 = vlaneseq
      %v729 = vshrl.u32 %v728, 7
      %v730 = vsub.s32 %v727, %v729
      %v731 = vrot.slane %v724, %v730
      %v732 = vcombine.high %v731, %v731
      %s734 = scalar_lea.vmem %s170, 2
      %735 = vst.msk [vmem:[%s734] ss:$4 sm:$0x7] %vm622, %v732
      %v736 = vrot.slane %v552, 4
      %v737 = vrot.slane %v553, 4
      %v738 = vrot.slane %v554, 4
      %v742 = vmax.f32 %v549, %v736
      %v743 = vmax.f32 %v550, %v737
      %v744 = vmax.f32 %v551, %v738
      %v745 = vrot.slane %v549, 7
      %v746 = vrot.slane %v550, 7
      %v747 = vrot.slane %v551, 7
      %v751 = vmax.f32 %v549, %v745
      %v752 = vmax.f32 %v550, %v746
      %v753 = vmax.f32 %v551, %v747
      %v757 = vrot.slane %v751, 3
      %v758 = vrot.slane %v752, 3
      %v759 = vrot.slane %v753, 3
      %v763 = vadd.f32 %v742, %v757
      %v764 = vadd.f32 %v743, %v758
      %v765 = vadd.f32 %v744, %v759
      %v766 = vmul.f32 %v763, 0.5
      %v767 = vmul.f32 %v764, 0.5
      %v768 = vmul.f32 %v765, 0.5
      %v772 = vcombine.high %v766, %v767
      %v773 = vcombine.high %v768, %v768
      %v775 = vunpack.c.l.s4 1966171168
      %v776 = vunpack.c.0.s8 %v775
      %v777 = vlaneseq
      %v778 = vshrl.u32 %v777, 7
      %v779 = vsub.s32 %v776, %v778
      %v780 = vrot.slane %v772, %v779
      %v782 = vunpack.c.l.s4 1966171168
      %v783 = vunpack.c.0.s8 %v782
      %v784 = vlaneseq
      %v785 = vshrl.u32 %v784, 7
      %v786 = vsub.s32 %v783, %v785
      %v787 = vrot.slane %v773, %v786
      %v788 = vcombine.high %v780, %v787
      %v790 = vunpack.c.l.s4 1966171168
      %v791 = vunpack.c.0.s8 %v790
      %v792 = vlaneseq
      %v793 = vshrl.u32 %v792, 7
      %v794 = vsub.s32 %v791, %v793
      %v795 = vrot.slane %v788, %v794
      %s797 = scalar_lea.vmem %s170, 3
      %798 = vst.msk [vmem:[%s797] ss:$4 sm:$0x7] %vm622, %v795
      %p799 = scmp.lt.s32.totalorder %s14, 1
      %s800 = scalar_select %p799, %s14, 1
      %s801 = smul.addr %s800, 3
      %s802 = smul.addr %s801, 4
      %s803 = scalar_lea.vmem %s3, %s802
      // Predicated region
      $region33: #{_run.1} parent=31 // pred_check
        %p804 = pneg %p100
      $region34: #{_run.1} parent=31 // pred_check_branch
        %806 = sbr.rel (%p804) target = $region36
      $region35: #{_run.1} parent=31 // pred_region
        _
      $region36: #{_run.1} parent=31 // pred_fallthru
        _
    $region32: #{_run.1} parent=5 // pred_fallthru
      _
    %p807 = scmp.le.s32.totalorder 2, %s9
    // Predicated region
    $region37: #{_run.1} parent=5 // pred_check
      %p808 = pneg %p807
    $region38: #{_run.1} parent=5 // pred_check_branch
      %810 = sbr.rel (%p808) target = $region40
    $region39: #{_run.1} parent=5 // pred_region
      %s811 = ssub.s32 %s9, 2
      // Predicated region
      $region41: #{_run.1} parent=39 // pred_check
        %p812 = pneg %p106
      $region42: #{_run.1} parent=39 // pred_check_branch
        %814 = sbr.rel (%p812) target = $region44
      $region43: #{_run.1} parent=39 // pred_region
        %p815 = scmp.lt.s32.totalorder %s15, 1
        %s816 = scalar_select %p815, %s15, 1
        %s817 = smul.addr %s816, 3
        %s818 = smul.addr %s817, 4
        %s819 = scalar_lea.vmem %s3, %s818
      $region44: #{_run.1} parent=39 // pred_fallthru
        _
    $region40: #{_run.1} parent=5 // pred_fallthru
      _
  $region6: #{_run.1} parent=0 // loop_footer
    %s13 = sadd.s32 1, %s9
  $region7: #{_run.1} parent=0 // loop_footer_branch
    %8 = sbr.rel target = $region3
  $region8: #{_run.1} parent=0 // loop_exit
    _

</llo_original>
